<compile_context>
chip_gen: v5e
topology: v5e:2x2
jax: 0.10.0
libtpu: 0.0.40
codegen_flags: <defaults>
</compile_context>

<pallas_src>
import functools

import jax
import jax.numpy as jnp
from jax.experimental import pallas as pl
from jax.experimental.pallas import tpu as pltpu


# ------------------------------ kernel bodies ------------------------------
def _bn_relu_linear2(h, g_ref, beta_ref, w2_ref, b2_ref, o_ref, eps):
    """Shared epilogue: training-mode BN (fused affine) -> ReLU -> Linear2."""
    mu = jnp.mean(h, axis=0, keepdims=True)                     # (1, H)
    var = jnp.mean((h - mu) ** 2, axis=0, keepdims=True)        # (1, H) biased
    scale = g_ref[...] * jax.lax.rsqrt(var + eps)                # (1, H)
    shift = beta_ref[...] - mu * scale                           # (1, H)
    hn = jnp.maximum(h * scale + shift, 0.0)                     # fused BN + ReLU
    out = jnp.dot(hn.astype(jnp.bfloat16), w2_ref[...],
                  preferred_element_type=jnp.float32) + b2_ref[...]
    o_ref[...] = out.astype(o_ref.dtype)


def _mlp_kernel_single(x_ref, w1_ref, g_ref, beta_ref, w2_ref, b2_ref,
                       o_ref, *, eps):
    """Whole problem in one grid step: no accumulator, no branches."""
    h = jnp.dot(x_ref[...].astype(jnp.bfloat16), w1_ref[...],
                preferred_element_type=jnp.float32)              # (N, H) f32
    _bn_relu_linear2(h, g_ref, beta_ref, w2_ref, b2_ref, o_ref, eps)


def _mlp_kernel_ktiled(x_ref, w1_ref, g_ref, beta_ref, w2_ref, b2_ref,
                       o_ref, h_acc, *, eps):
    """Fallback for large in_dim: stream K tiles, accumulate layer-1 in VMEM."""
    k = pl.program_id(0)

    @pl.when(k == 0)
    def _init():
        h_acc[...] = jnp.zeros_like(h_acc)

    h_acc[...] += jnp.dot(x_ref[...].astype(jnp.bfloat16), w1_ref[...],
                          preferred_element_type=jnp.float32)

    @pl.when(k == pl.num_programs(0) - 1)
    def _finalize():
        _bn_relu_linear2(h_acc[...], g_ref, beta_ref, w2_ref, b2_ref, o_ref, eps)


# ------------------------------ host wrappers ------------------------------
def prepare_params(params):
    """One-time param prep (NOT per forward): pre-transposed bf16 weights and
    2-D f32 BN / bias rows.  b1 is intentionally dropped (cancelled by BN)."""
    H = params['b1'].shape[0]
    O = params['b2'].shape[0]
    return {
        'w1t': jnp.transpose(params['w1']).astype(jnp.bfloat16),   # (Din, H)
        'w2t': jnp.transpose(params['w2']).astype(jnp.bfloat16),   # (H, O)
        'gamma': params['gamma'].reshape(1, H).astype(jnp.float32),
        'beta': params['beta'].reshape(1, H).astype(jnp.float32),
        'b2': params['b2'].reshape(1, O).astype(jnp.float32),
    }


def prediction_mlp(x, prep, *, eps=1e-5, tk=None):
    """x: (N, in_dim) float32 -> (N, out_dim) float32."""
    N, Din = x.shape
    H = prep['w1t'].shape[1]
    O = prep['w2t'].shape[1]

    def footprint(tk_, single):
        streamed = 2 * (N * tk_ * 4 + tk_ * H * 2)        # double-buffered x, w1
        resident = H * O * 2 + N * O * 4 + (2 * H + O) * 4  # w2, out, gamma/beta/b2
        acc = 0 if single else N * H * 4
        return streamed + resident + acc

    # Conservative VMEM budget sized against v7x's 64 MiB physical VMEM.
    budget = 24 * 1024 * 1024
    if tk is None:
        if footprint(Din, True) <= budget:
            tk = Din
        else:
            cands = [t for t in (2048, 1024, 512, 256, 128) if Din % t == 0]
            tk = next((t for t in cands if footprint(t, False) <= budget),
                      cands[-1])
    assert Din % tk == 0, "in_dim must be divisible by the K tile"

    single = (tk == Din)
    fp = footprint(tk, single)
    vmem_limit = int(min(60 * 1024 * 1024, max(8 * 1024 * 1024, 2 * fp)))

    in_specs = [
        pl.BlockSpec((N, tk), lambda k: (0, k)),   # x (f32, cast in kernel)
        pl.BlockSpec((tk, H), lambda k: (k, 0)),   # w1^T tile
        pl.BlockSpec((1, H), lambda k: (0, 0)),    # gamma (resident)
        pl.BlockSpec((1, H), lambda k: (0, 0)),    # beta  (resident)
        pl.BlockSpec((H, O), lambda k: (0, 0)),    # w2^T  (resident)
        pl.BlockSpec((1, O), lambda k: (0, 0)),    # b2    (resident)
    ]
    out_spec = pl.BlockSpec((N, O), lambda k: (0, 0))

    if single:
        kernel = functools.partial(_mlp_kernel_single, eps=eps)
        scratch = []
    else:
        kernel = functools.partial(_mlp_kernel_ktiled, eps=eps)
        scratch = [pltpu.VMEM((N, H), jnp.float32)]

    return pl.pallas_call(
        kernel,
        out_shape=jax.ShapeDtypeStruct((N, O), x.dtype),
        grid_spec=pltpu.PrefetchScalarGridSpec(
            num_scalar_prefetch=0,
            grid=(Din // tk,),
            in_specs=in_specs,
            out_specs=out_spec,
            scratch_shapes=scratch,
        ),
        compiler_params=pltpu.CompilerParams(
            dimension_semantics=("arbitrary",),      # K is a reduction axis
            vmem_limit_bytes=vmem_limit,
        ),
    )(x, prep['w1t'], prep['gamma'], prep['beta'], prep['w2t'], prep['b2'])


# ----------------------------- pure-JAX reference -----------------------------
def _reference(x, p, eps=1e-5):
    h = x @ p['w1'].T + p['b1']
    mu = jnp.mean(h, axis=0)
    var = jnp.mean((h - mu) ** 2, axis=0)
    hn = (h - mu) * jax.lax.rsqrt(var + eps) * p['gamma'] + p['beta']
    hn = jnp.maximum(hn, 0.0)
    return hn @ p['w2'].T + p['b2']


def init_params(key, in_dim, hidden_dim, out_dim):
    ks = jax.random.split(key, 6)
    s = 0.02
    f32 = jnp.float32
    return {
        'w1': s * jax.random.normal(ks[0], (hidden_dim, in_dim), f32),
        'b1': s * jax.random.normal(ks[1], (hidden_dim,), f32),
        'gamma': 1.0 + 0.1 * jax.random.normal(ks[2], (hidden_dim,), f32),
        'beta': 0.1 * jax.random.normal(ks[3], (hidden_dim,), f32),
        'w2': s * jax.random.normal(ks[4], (out_dim, hidden_dim), f32),
        'b2': s * jax.random.normal(ks[5], (out_dim,), f32),
    }


if __name__ == "__main__":
    # Small bottleneck-MLP shapes consistent with the module: in=512,
    # hidden=128, out=256, batch=64.  All lane dims are multiples of 128.
    batch, in_dim, hidden_dim, out_dim = 64, 512, 128, 256

    key = jax.random.PRNGKey(0)
    k_x, k_p = jax.random.split(key)
    x = jax.random.normal(k_x, (batch, in_dim), jnp.float32)
    params = init_params(k_p, in_dim, hidden_dim, out_dim)
    prep = prepare_params(params)          # one-time, outside the forward path

    ref = _reference(x, params)

    # Default path: single grid step (no accumulator, no branches).
    out = jax.block_until_ready(prediction_mlp(x, prep))
    assert out.shape == (batch, out_dim) and out.dtype == jnp.float32
    err = float(jnp.max(jnp.abs(out - ref)))
    assert jnp.allclose(out, ref, rtol=2e-2, atol=2e-2), \
        f"single-step mismatch vs reference (max abs err {err})"

    # Fallback path: forced 2-step K grid with the VMEM accumulator.
    out_t = jax.block_until_ready(prediction_mlp(x, prep, tk=256))
    err_t = float(jnp.max(jnp.abs(out_t - ref)))
    assert jnp.allclose(out_t, ref, rtol=2e-2, atol=2e-2), \
        f"K-tiled mismatch vs reference (max abs err {err_t})"

    print("KERNEL_OK")
</pallas_src>

<mosaic_0001>
module attributes {stable_mosaic.version = 11 : i64} {
  func.func @_mlp_kernel_single(%arg0: i32, %arg1: memref<64x512xf32, #tpu.memory_space<vmem>>, %arg2: memref<512x128xbf16, #tpu.memory_space<vmem>>, %arg3: memref<1x128xf32, #tpu.memory_space<vmem>>, %arg4: memref<1x128xf32, #tpu.memory_space<vmem>>, %arg5: memref<128x256xbf16, #tpu.memory_space<vmem>>, %arg6: memref<1x256xf32, #tpu.memory_space<vmem>>, %arg7: memref<64x256xf32, #tpu.memory_space<vmem>>) attributes {dimension_semantics = [#tpu.dimension_semantics<arbitrary>], iteration_bounds = array<i64: 1>, scalar_prefetch = 0 : i64, scratch_operands = 0 : i64, tpu.core_type = #tpu.core_type<tc>, window_params = [{transform_indices = @transform_0, window_bounds = array<i64: 64, 512>}, {transform_indices = @transform_1, window_bounds = array<i64: 512, 128>}, {pipeline_mode = #tpu.pipeline_mode<synchronous>, transform_indices = @transform_2, window_bounds = array<i64: 1, 128>}, {pipeline_mode = #tpu.pipeline_mode<synchronous>, transform_indices = @transform_3, window_bounds = array<i64: 1, 128>}, {pipeline_mode = #tpu.pipeline_mode<synchronous>, transform_indices = @transform_4, window_bounds = array<i64: 128, 256>}, {pipeline_mode = #tpu.pipeline_mode<synchronous>, transform_indices = @transform_5, window_bounds = array<i64: 1, 256>}, {pipeline_mode = #tpu.pipeline_mode<synchronous>, transform_indices = @transform_6, window_bounds = array<i64: 64, 256>}]} {
    %c0 = arith.constant 0 : index
    %c0_0 = arith.constant 0 : index
    %0 = vector.load %arg1[%c0, %c0_0] : memref<64x512xf32, #tpu.memory_space<vmem>>, vector<64x512xf32>
    %1 = arith.truncf %0 : vector<64x512xf32> to vector<64x512xbf16>
    %c0_1 = arith.constant 0 : index
    %c0_2 = arith.constant 0 : index
    %2 = vector.load %arg2[%c0_1, %c0_2] : memref<512x128xbf16, #tpu.memory_space<vmem>>, vector<512x128xbf16>
    %cst = arith.constant dense<0.000000e+00> : vector<64x128xf32>
    %3 = tpu.matmul %1, %2, %cst {dimension_numbers = #tpu.dot_dimension_numbers<[1], [0], [0], [1], [0, 0, 1, 1], [], []>} : vector<64x512xbf16>, vector<512x128xbf16>, vector<64x128xf32> -> vector<64x128xf32>
    %cst_3 = arith.constant dense<0.000000e+00> : vector<128xf32>
    %4 = vector.multi_reduction <add>, %3, %cst_3 [0] : vector<64x128xf32> to vector<128xf32>
    %5 = vector.shape_cast %4 : vector<128xf32> to vector<1x128xf32>
    %cst_4 = arith.constant 6.400000e+01 : f32
    %6 = vector.broadcast %cst_4 : f32 to vector<1x128xf32>
    %7 = arith.divf %5, %6 : vector<1x128xf32>
    %8 = vector.broadcast %7 : vector<1x128xf32> to vector<64x128xf32>
    %9 = arith.subf %3, %8 : vector<64x128xf32>
    %10 = arith.mulf %9, %9 : vector<64x128xf32>
    %cst_5 = arith.constant dense<0.000000e+00> : vector<128xf32>
    %11 = vector.multi_reduction <add>, %10, %cst_5 [0] : vector<64x128xf32> to vector<128xf32>
    %12 = vector.shape_cast %11 : vector<128xf32> to vector<1x128xf32>
    %cst_6 = arith.constant 6.400000e+01 : f32
    %13 = vector.broadcast %cst_6 : f32 to vector<1x128xf32>
    %14 = arith.divf %12, %13 : vector<1x128xf32>
    %c0_7 = arith.constant 0 : index
    %c0_8 = arith.constant 0 : index
    %15 = vector.load %arg3[%c0_7, %c0_8] : memref<1x128xf32, #tpu.memory_space<vmem>>, vector<1x128xf32>
    %cst_9 = arith.constant 9.99999974E-6 : f32
    %16 = vector.broadcast %cst_9 : f32 to vector<1x128xf32>
    %17 = arith.addf %14, %16 : vector<1x128xf32>
    %18 = math.rsqrt %17 : vector<1x128xf32>
    %19 = arith.mulf %15, %18 : vector<1x128xf32>
    %c0_10 = arith.constant 0 : index
    %c0_11 = arith.constant 0 : index
    %20 = vector.load %arg4[%c0_10, %c0_11] : memref<1x128xf32, #tpu.memory_space<vmem>>, vector<1x128xf32>
    %21 = arith.mulf %7, %19 : vector<1x128xf32>
    %22 = arith.subf %20, %21 : vector<1x128xf32>
    %23 = vector.broadcast %19 : vector<1x128xf32> to vector<64x128xf32>
    %24 = arith.mulf %3, %23 : vector<64x128xf32>
    %25 = vector.broadcast %22 : vector<1x128xf32> to vector<64x128xf32>
    %26 = arith.addf %24, %25 : vector<64x128xf32>
    %cst_12 = arith.constant 0.000000e+00 : f32
    %27 = vector.broadcast %cst_12 : f32 to vector<64x128xf32>
    %28 = arith.maximumf %26, %27 : vector<64x128xf32>
    %29 = arith.truncf %28 : vector<64x128xf32> to vector<64x128xbf16>
    %c0_13 = arith.constant 0 : index
    %c0_14 = arith.constant 0 : index
    %30 = vector.load %arg5[%c0_13, %c0_14] : memref<128x256xbf16, #tpu.memory_space<vmem>>, vector<128x256xbf16>
    %cst_15 = arith.constant dense<0.000000e+00> : vector<64x256xf32>
    %31 = tpu.matmul %29, %30, %cst_15 {dimension_numbers = #tpu.dot_dimension_numbers<[1], [0], [0], [1], [0, 0, 1, 1], [], []>} : vector<64x128xbf16>, vector<128x256xbf16>, vector<64x256xf32> -> vector<64x256xf32>
    %c0_16 = arith.constant 0 : index
    %c0_17 = arith.constant 0 : index
    %32 = vector.load %arg6[%c0_16, %c0_17] : memref<1x256xf32, #tpu.memory_space<vmem>>, vector<1x256xf32>
    %33 = vector.broadcast %32 : vector<1x256xf32> to vector<64x256xf32>
    %34 = arith.addf %31, %33 : vector<64x256xf32>
    %c0_18 = arith.constant 0 : index
    %c0_19 = arith.constant 0 : index
    %35 = vector.load %arg7[%c0_18, %c0_19] : memref<64x256xf32, #tpu.memory_space<vmem>>, vector<64x256xf32>
    tpu.vector_store %arg7[%c0_18, %c0_19], %34 {strides = array<i32>} : memref<64x256xf32, #tpu.memory_space<vmem>>, vector<64x256xf32>,
    return
  }
  func.func @transform_0(%arg0: i32) -> (i32, i32) {
    %c0_i32 = arith.constant 0 : i32
    %c0_i32_0 = arith.constant 0 : i32
    return %c0_i32, %arg0 : i32, i32
  }
  func.func @transform_1(%arg0: i32) -> (i32, i32) {
    %c0_i32 = arith.constant 0 : i32
    %c0_i32_0 = arith.constant 0 : i32
    return %arg0, %c0_i32 : i32, i32
  }
  func.func @transform_2(%arg0: i32) -> (i32, i32) {
    %c0_i32 = arith.constant 0 : i32
    %c0_i32_0 = arith.constant 0 : i32
    %c0_i32_1 = arith.constant 0 : i32
    return %c0_i32, %c0_i32_0 : i32, i32
  }
  func.func @transform_3(%arg0: i32) -> (i32, i32) {
    %c0_i32 = arith.constant 0 : i32
    %c0_i32_0 = arith.constant 0 : i32
    %c0_i32_1 = arith.constant 0 : i32
    return %c0_i32, %c0_i32_0 : i32, i32
  }
  func.func @transform_4(%arg0: i32) -> (i32, i32) {
    %c0_i32 = arith.constant 0 : i32
    %c0_i32_0 = arith.constant 0 : i32
    %c0_i32_1 = arith.constant 0 : i32
    return %c0_i32, %c0_i32_0 : i32, i32
  }
  func.func @transform_5(%arg0: i32) -> (i32, i32) {
    %c0_i32 = arith.constant 0 : i32
    %c0_i32_0 = arith.constant 0 : i32
    %c0_i32_1 = arith.constant 0 : i32
    return %c0_i32, %c0_i32_0 : i32, i32
  }
  func.func @transform_6(%arg0: i32) -> (i32, i32) {
    %c0_i32 = arith.constant 0 : i32
    %c0_i32_0 = arith.constant 0 : i32
    %c0_i32_1 = arith.constant 0 : i32
    return %c0_i32, %c0_i32_0 : i32, i32
  }
}

</mosaic_0001>

<llo_original>
// kernel: tpu_custom_call.1
$region0: #{tpu_custom_call.1}
  #allocation0 [shape = 'u32[]', space=smem, size = 0x4, offset = 0x4, fixed_abs, tag = 'smem constant byte address 0x4 - core index']
  #allocation1 [shape = 'u32[72,128]{1,0:T(1,128)}', space=vmem, size = 0x9000, scoped, tag = 'internal scratch']
  %s0 = inlined_call_operand.hbm [shape: f32[64,512], index: 0, kind: input, shape index: {}]
  %s1 = inlined_call_operand.hbm [shape: bf16[512,128], index: 1, kind: input, shape index: {}]
  %s2 = inlined_call_operand.vmem [shape: f32[1,128], index: 2, kind: input, shape index: {}]
  %s3 = inlined_call_operand.hbm [shape: f32[1,128], index: 3, kind: input, shape index: {}]
  %s4 = inlined_call_operand.hbm [shape: bf16[128,256], index: 4, kind: input, shape index: {}]
  %s5 = inlined_call_operand.vmem [shape: f32[1,256], index: 5, kind: input, shape index: {}]
  %s6 = inlined_call_operand.hbm [shape: f32[64,256], index: 6, kind: output, shape index: {}]
  %s7 = sld [smem:[#allocation0]]
  $region50: #{tpu_custom_call.1} parent=0
    _
  %s9 = ssub.s32 1, %s7
  %s10 = scalar_select 0, %s9, %s7
  $region1: #{tpu_custom_call.1} parent=0
    #allocation2 [shape = 'u8[131072]{0}', space=vmem, size = 0x20000, scoped, tag = 'input window, operand 0, single buffered']
    #allocation3 [shape = 's32[1]{0}', space=sflag, size = 0x4, scoped, tag = 'scoped memory for tpu_custom_call.1']
    #allocation4 [shape = 's32[1]{0}', space=sflag, size = 0x4, scoped, tag = 'scoped memory for tpu_custom_call.1']
    #allocation5 [shape = 'u8[131072]{0}', space=vmem, size = 0x20000, scoped, tag = 'input window, operand 1, single buffered']
    #allocation6 [shape = 's32[1]{0}', space=sflag, size = 0x4, scoped, tag = 'scoped memory for tpu_custom_call.1']
    #allocation7 [shape = 'u8[512]{0}', space=vmem, size = 0x400, scoped, tag = 'input window, operand 3, single buffered']
    #allocation8 [shape = 'u8[65536]{0}', space=vmem, size = 0x10000, scoped, tag = 'input window, operand 4, single buffered']
    #allocation9 [shape = 's32[1]{0}', space=sflag, size = 0x4, scoped, tag = 'scoped memory for tpu_custom_call.1']
    #allocation10 [shape = 'u8[65536]{0}', space=vmem, size = 0x10000, scoped, tag = 'output window, operand 0, single buffered']
    %11 = vsyncpa [#allocation3], 0
    %12 = vsyncpa [#allocation6], 0
    %13 = vsyncpa [#allocation9], 0
    %14 = vsyncpa [#allocation4], 0
    // Predicated region
    $region2: #{tpu_custom_call.1} parent=1 // pred_check
      _
    $region3: #{tpu_custom_call.1} parent=1 // pred_check_branch
      %16 = sbr.rel (0) target = $region5
    $region4: #{tpu_custom_call.1} parent=1 // pred_region
      %18 = vsyncadd [#allocation3], 0
      %s19 = sshll.u32 %s0, 4
      %s20 = int_to_ptr.hbm [resolvable:$true] %s19
      %s21 = sshll.u32 [#allocation2], 4
      %s22 = int_to_ptr.vmem [resolvable:$true] %s21
      %27 = dma.hbm_to_vmem [thread:$0]  %s20, 4096, %s22, [#allocation3], 512, 512, 32
    $region5: #{tpu_custom_call.1} parent=1 // pred_fallthru
      _
    // Predicated region
    $region6: #{tpu_custom_call.1} parent=1 // pred_check
      _
    $region7: #{tpu_custom_call.1} parent=1 // pred_check_branch
      %29 = sbr.rel (0) target = $region9
    $region8: #{tpu_custom_call.1} parent=1 // pred_region
      %31 = vsyncadd [#allocation6], 0
      %s32 = sshll.u32 %s1, 4
      %s33 = int_to_ptr.hbm [resolvable:$true] %s32
      %s34 = sshll.u32 [#allocation5], 4
      %s35 = int_to_ptr.vmem [resolvable:$true] %s34
      %40 = dma.hbm_to_vmem [thread:$0]  %s33, 4096, %s35, [#allocation6], 64, 64, 4
    $region9: #{tpu_custom_call.1} parent=1 // pred_fallthru
      _
    // Predicated region
    $region10: #{tpu_custom_call.1} parent=1 // pred_check
      _
    $region11: #{tpu_custom_call.1} parent=1 // pred_check_branch
      %42 = sbr.rel (0) target = $region13
    $region12: #{tpu_custom_call.1} parent=1 // pred_region
      _
    $region13: #{tpu_custom_call.1} parent=1 // pred_fallthru
      _
    // Predicated region
    $region14: #{tpu_custom_call.1} parent=1 // pred_check
      _
    $region15: #{tpu_custom_call.1} parent=1 // pred_check_branch
      %44 = sbr.rel (0) target = $region17
    $region16: #{tpu_custom_call.1} parent=1 // pred_region
      %46 = vsyncadd [#allocation6], 0
      %s48 = sshll.u32 %s3, 4
      %s49 = int_to_ptr.hbm [resolvable:$true] %s48
      %s50 = sshll.u32 [#allocation7], 4
      %s51 = int_to_ptr.vmem [resolvable:$true] %s50
      %53 = dma.hbm_to_vmem [thread:$0]  %s49, 16, %s51, [#allocation6]
    $region17: #{tpu_custom_call.1} parent=1 // pred_fallthru
      _
    // Predicated region
    $region18: #{tpu_custom_call.1} parent=1 // pred_check
      _
    $region19: #{tpu_custom_call.1} parent=1 // pred_check_branch
      %55 = sbr.rel (0) target = $region21
    $region20: #{tpu_custom_call.1} parent=1 // pred_region
      %57 = vsyncadd [#allocation9], 0
      %s58 = sshll.u32 %s4, 4
      %s59 = int_to_ptr.hbm [resolvable:$true] %s58
      %s60 = sshll.u32 [#allocation8], 4
      %s61 = int_to_ptr.vmem [resolvable:$true] %s60
      %66 = dma.hbm_to_vmem [thread:$0]  %s59, 2048, %s61, [#allocation9], 128, 128, 8
    $region21: #{tpu_custom_call.1} parent=1 // pred_fallthru
      _
    // Predicated region
    $region22: #{tpu_custom_call.1} parent=1 // pred_check
      _
    $region23: #{tpu_custom_call.1} parent=1 // pred_check_branch
      %68 = sbr.rel (0) target = $region25
    $region24: #{tpu_custom_call.1} parent=1 // pred_region
      _
    $region25: #{tpu_custom_call.1} parent=1 // pred_fallthru
      _
    // Predicated region
    $region26: #{tpu_custom_call.1} parent=1 // pred_check
      _
    $region27: #{tpu_custom_call.1} parent=1 // pred_check_branch
      %70 = sbr.rel (0) target = $region29
    $region28: #{tpu_custom_call.1} parent=1 // pred_region
      %72 = dma.done [#allocation3], 4096
    $region29: #{tpu_custom_call.1} parent=1 // pred_fallthru
      _
    // Predicated region
    $region30: #{tpu_custom_call.1} parent=1 // pred_check
      _
    $region31: #{tpu_custom_call.1} parent=1 // pred_check_branch
      %74 = sbr.rel (0) target = $region33
    $region32: #{tpu_custom_call.1} parent=1 // pred_region
      %76 = dma.done [#allocation6], 4096
    $region33: #{tpu_custom_call.1} parent=1 // pred_fallthru
      _
    // Predicated region
    $region34: #{tpu_custom_call.1} parent=1 // pred_check
      _
    $region35: #{tpu_custom_call.1} parent=1 // pred_check_branch
      %78 = sbr.rel (0) target = $region37
    $region36: #{tpu_custom_call.1} parent=1 // pred_region
      %80 = dma.done [#allocation6], 16
    $region37: #{tpu_custom_call.1} parent=1 // pred_fallthru
      _
    // Predicated region
    $region38: #{tpu_custom_call.1} parent=1 // pred_check
      _
    $region39: #{tpu_custom_call.1} parent=1 // pred_check_branch
      %82 = sbr.rel (0) target = $region41
    $region40: #{tpu_custom_call.1} parent=1 // pred_region
      %84 = dma.done [#allocation9], 2048
    $region41: #{tpu_custom_call.1} parent=1 // pred_fallthru
      _
    %v85 = vld [vmem:[#allocation2] sm:$0xff]
    %v86 = vld [vmem:[#allocation2 + $0x8] sm:$0xff]
    %v87 = vld [vmem:[#allocation2 + $0x10] sm:$0xff]
    %v88 = vld [vmem:[#allocation2 + $0x18] sm:$0xff]
    %v89 = vld [vmem:[#allocation2 + $0x20] sm:$0xff]
    %v90 = vld [vmem:[#allocation2 + $0x28] sm:$0xff]
    %v91 = vld [vmem:[#allocation2 + $0x30] sm:$0xff]
    %v92 = vld [vmem:[#allocation2 + $0x38] sm:$0xff]
    %v93 = vld [vmem:[#allocation2 + $0x40] sm:$0xff]
    %v94 = vld [vmem:[#allocation2 + $0x48] sm:$0xff]
    %v95 = vld [vmem:[#allocation2 + $0x50] sm:$0xff]
    %v96 = vld [vmem:[#allocation2 + $0x58] sm:$0xff]
    %v97 = vld [vmem:[#allocation2 + $0x60] sm:$0xff]
    %v98 = vld [vmem:[#allocation2 + $0x68] sm:$0xff]
    %v99 = vld [vmem:[#allocation2 + $0x70] sm:$0xff]
    %v100 = vld [vmem:[#allocation2 + $0x78] sm:$0xff]
    %v101 = vld [vmem:[#allocation2 + $0x80] sm:$0xff]
    %v102 = vld [vmem:[#allocation2 + $0x88] sm:$0xff]
    %v103 = vld [vmem:[#allocation2 + $0x90] sm:$0xff]
    %v104 = vld [vmem:[#allocation2 + $0x98] sm:$0xff]
    %v105 = vld [vmem:[#allocation2 + $0xa0] sm:$0xff]
    %v106 = vld [vmem:[#allocation2 + $0xa8] sm:$0xff]
    %v107 = vld [vmem:[#allocation2 + $0xb0] sm:$0xff]
    %v108 = vld [vmem:[#allocation2 + $0xb8] sm:$0xff]
    %v109 = vld [vmem:[#allocation2 + $0xc0] sm:$0xff]
    %v110 = vld [vmem:[#allocation2 + $0xc8] sm:$0xff]
    %v111 = vld [vmem:[#allocation2 + $0xd0] sm:$0xff]
    %v112 = vld [vmem:[#allocation2 + $0xd8] sm:$0xff]
    %v113 = vld [vmem:[#allocation2 + $0xe0] sm:$0xff]
    %v114 = vld [vmem:[#allocation2 + $0xe8] sm:$0xff]
    %v115 = vld [vmem:[#allocation2 + $0xf0] sm:$0xff]
    %v116 = vld [vmem:[#allocation2 + $0xf8] sm:$0xff]
    %v117 = vpack.c.bf16 %v89, %v85
    %v118 = vpack.c.bf16 %v90, %v86
    %v119 = vpack.c.bf16 %v91, %v87
    %v120 = vpack.c.bf16 %v92, %v88
    %v121 = vpack.c.bf16 %v97, %v93
    %v122 = vpack.c.bf16 %v98, %v94
    %v123 = vpack.c.bf16 %v99, %v95
    %v124 = vpack.c.bf16 %v100, %v96
    %v125 = vpack.c.bf16 %v105, %v101
    %v126 = vpack.c.bf16 %v106, %v102
    %v127 = vpack.c.bf16 %v107, %v103
    %v128 = vpack.c.bf16 %v108, %v104
    %v129 = vpack.c.bf16 %v113, %v109
    %v130 = vpack.c.bf16 %v114, %v110
    %v131 = vpack.c.bf16 %v115, %v111
    %v132 = vpack.c.bf16 %v116, %v112
    %v133 = vld [vmem:[#allocation5] sm:$0xf]
    %v134 = vld [vmem:[#allocation5 + $0x4] sm:$0xf]
    %v135 = vld [vmem:[#allocation5 + $0x8] sm:$0xf]
    %v136 = vld [vmem:[#allocation5 + $0xc] sm:$0xf]
    %v137 = vld [vmem:[#allocation5 + $0x10] sm:$0xf]
    %v138 = vld [vmem:[#allocation5 + $0x14] sm:$0xf]
    %v139 = vld [vmem:[#allocation5 + $0x18] sm:$0xf]
    %v140 = vld [vmem:[#allocation5 + $0x1c] sm:$0xf]
    %v141 = vld [vmem:[#allocation5 + $0x20] sm:$0xf]
    %v142 = vld [vmem:[#allocation5 + $0x24] sm:$0xf]
    %v143 = vld [vmem:[#allocation5 + $0x28] sm:$0xf]
    %v144 = vld [vmem:[#allocation5 + $0x2c] sm:$0xf]
    %v145 = vld [vmem:[#allocation5 + $0x30] sm:$0xf]
    %v146 = vld [vmem:[#allocation5 + $0x34] sm:$0xf]
    %v147 = vld [vmem:[#allocation5 + $0x38] sm:$0xf]
    %v148 = vld [vmem:[#allocation5 + $0x3c] sm:$0xf]
    %v149 = vld [vmem:[#allocation5 + $0x40] sm:$0xf]
    %v150 = vld [vmem:[#allocation5 + $0x44] sm:$0xf]
    %v151 = vld [vmem:[#allocation5 + $0x48] sm:$0xf]
    %v152 = vld [vmem:[#allocation5 + $0x4c] sm:$0xf]
    %v153 = vld [vmem:[#allocation5 + $0x50] sm:$0xf]
    %v154 = vld [vmem:[#allocation5 + $0x54] sm:$0xf]
    %v155 = vld [vmem:[#allocation5 + $0x58] sm:$0xf]
    %v156 = vld [vmem:[#allocation5 + $0x5c] sm:$0xf]
    %v157 = vld [vmem:[#allocation5 + $0x60] sm:$0xf]
    %v158 = vld [vmem:[#allocation5 + $0x64] sm:$0xf]
    %v159 = vld [vmem:[#allocation5 + $0x68] sm:$0xf]
    %v160 = vld [vmem:[#allocation5 + $0x6c] sm:$0xf]
    %v161 = vld [vmem:[#allocation5 + $0x70] sm:$0xf]
    %v162 = vld [vmem:[#allocation5 + $0x74] sm:$0xf]
    %v163 = vld [vmem:[#allocation5 + $0x78] sm:$0xf]
    %v164 = vld [vmem:[#allocation5 + $0x7c] sm:$0xf]
    %v165 = vld [vmem:[#allocation5 + $0x80] sm:$0xf]
    %v166 = vld [vmem:[#allocation5 + $0x84] sm:$0xf]
    %v167 = vld [vmem:[#allocation5 + $0x88] sm:$0xf]
    %v168 = vld [vmem:[#allocation5 + $0x8c] sm:$0xf]
    %v169 = vld [vmem:[#allocation5 + $0x90] sm:$0xf]
    %v170 = vld [vmem:[#allocation5 + $0x94] sm:$0xf]
    %v171 = vld [vmem:[#allocation5 + $0x98] sm:$0xf]
    %v172 = vld [vmem:[#allocation5 + $0x9c] sm:$0xf]
    %v173 = vld [vmem:[#allocation5 + $0xa0] sm:$0xf]
    %v174 = vld [vmem:[#allocation5 + $0xa4] sm:$0xf]
    %v175 = vld [vmem:[#allocation5 + $0xa8] sm:$0xf]
    %v176 = vld [vmem:[#allocation5 + $0xac] sm:$0xf]
    %v177 = vld [vmem:[#allocation5 + $0xb0] sm:$0xf]
    %v178 = vld [vmem:[#allocation5 + $0xb4] sm:$0xf]
    %v179 = vld [vmem:[#allocation5 + $0xb8] sm:$0xf]
    %v180 = vld [vmem:[#allocation5 + $0xbc] sm:$0xf]
    %v181 = vld [vmem:[#allocation5 + $0xc0] sm:$0xf]
    %v182 = vld [vmem:[#allocation5 + $0xc4] sm:$0xf]
    %v183 = vld [vmem:[#allocation5 + $0xc8] sm:$0xf]
    %v184 = vld [vmem:[#allocation5 + $0xcc] sm:$0xf]
    %v185 = vld [vmem:[#allocation5 + $0xd0] sm:$0xf]
    %v186 = vld [vmem:[#allocation5 + $0xd4] sm:$0xf]
    %v187 = vld [vmem:[#allocation5 + $0xd8] sm:$0xf]
    %v188 = vld [vmem:[#allocation5 + $0xdc] sm:$0xf]
    %v189 = vld [vmem:[#allocation5 + $0xe0] sm:$0xf]
    %v190 = vld [vmem:[#allocation5 + $0xe4] sm:$0xf]
    %v191 = vld [vmem:[#allocation5 + $0xe8] sm:$0xf]
    %v192 = vld [vmem:[#allocation5 + $0xec] sm:$0xf]
    %v193 = vld [vmem:[#allocation5 + $0xf0] sm:$0xf]
    %v194 = vld [vmem:[#allocation5 + $0xf4] sm:$0xf]
    %v195 = vld [vmem:[#allocation5 + $0xf8] sm:$0xf]
    %v196 = vld [vmem:[#allocation5 + $0xfc] sm:$0xf]
    %v261 = vunpack.c.l.b16 %v133
    %v262 = vunpack.c.l.b16 %v134
    %v263 = vunpack.c.l.b16 %v135
    %v264 = vunpack.c.l.b16 %v136
    %v265 = vunpack.c.l.b16 %v137
    %v266 = vunpack.c.l.b16 %v138
    %v267 = vunpack.c.l.b16 %v139
    %v268 = vunpack.c.l.b16 %v140
    %v269 = vunpack.c.l.b16 %v141
    %v270 = vunpack.c.l.b16 %v142
    %v271 = vunpack.c.l.b16 %v143
    %v272 = vunpack.c.l.b16 %v144
    %v273 = vunpack.c.l.b16 %v145
    %v274 = vunpack.c.l.b16 %v146
    %v275 = vunpack.c.l.b16 %v147
    %v276 = vunpack.c.l.b16 %v148
    %v277 = vunpack.c.l.b16 %v149
    %v278 = vunpack.c.l.b16 %v150
    %v279 = vunpack.c.l.b16 %v151
    %v280 = vunpack.c.l.b16 %v152
    %v281 = vunpack.c.l.b16 %v153
    %v282 = vunpack.c.l.b16 %v154
    %v283 = vunpack.c.l.b16 %v155
    %v284 = vunpack.c.l.b16 %v156
    %v285 = vunpack.c.l.b16 %v157
    %v286 = vunpack.c.l.b16 %v158
    %v287 = vunpack.c.l.b16 %v159
    %v288 = vunpack.c.l.b16 %v160
    %v289 = vunpack.c.l.b16 %v161
    %v290 = vunpack.c.l.b16 %v162
    %v291 = vunpack.c.l.b16 %v163
    %v292 = vunpack.c.l.b16 %v164
    %v293 = vunpack.c.l.b16 %v165
    %v294 = vunpack.c.l.b16 %v166
    %v295 = vunpack.c.l.b16 %v167
    %v296 = vunpack.c.l.b16 %v168
    %v297 = vunpack.c.l.b16 %v169
    %v298 = vunpack.c.l.b16 %v170
    %v299 = vunpack.c.l.b16 %v171
    %v300 = vunpack.c.l.b16 %v172
    %v301 = vunpack.c.l.b16 %v173
    %v302 = vunpack.c.l.b16 %v174
    %v303 = vunpack.c.l.b16 %v175
    %v304 = vunpack.c.l.b16 %v176
    %v305 = vunpack.c.l.b16 %v177
    %v306 = vunpack.c.l.b16 %v178
    %v307 = vunpack.c.l.b16 %v179
    %v308 = vunpack.c.l.b16 %v180
    %v309 = vunpack.c.l.b16 %v181
    %v310 = vunpack.c.l.b16 %v182
    %v311 = vunpack.c.l.b16 %v183
    %v312 = vunpack.c.l.b16 %v184
    %v313 = vunpack.c.l.b16 %v185
    %v314 = vunpack.c.l.b16 %v186
    %v315 = vunpack.c.l.b16 %v187
    %v316 = vunpack.c.l.b16 %v188
    %v317 = vunpack.c.l.b16 %v189
    %v318 = vunpack.c.l.b16 %v190
    %v319 = vunpack.c.l.b16 %v191
    %v320 = vunpack.c.l.b16 %v192
    %v321 = vunpack.c.l.b16 %v193
    %v322 = vunpack.c.l.b16 %v194
    %v323 = vunpack.c.l.b16 %v195
    %v324 = vunpack.c.l.b16 %v196
    %v325 = vpack.c.b16 %v262, %v261
    %v326 = vpack.c.b16 %v264, %v263
    %v327 = vpack.c.b16 %v266, %v265
    %v328 = vpack.c.b16 %v268, %v267
    %v329 = vpack.c.b16 %v270, %v269
    %v330 = vpack.c.b16 %v272, %v271
    %v331 = vpack.c.b16 %v274, %v273
    %v332 = vpack.c.b16 %v276, %v275
    %v333 = vpack.c.b16 %v278, %v277
    %v334 = vpack.c.b16 %v280, %v279
    %v335 = vpack.c.b16 %v282, %v281
    %v336 = vpack.c.b16 %v284, %v283
    %v337 = vpack.c.b16 %v286, %v285
    %v338 = vpack.c.b16 %v288, %v287
    %v339 = vpack.c.b16 %v290, %v289
    %v340 = vpack.c.b16 %v292, %v291
    %v341 = vpack.c.b16 %v294, %v293
    %v342 = vpack.c.b16 %v296, %v295
    %v343 = vpack.c.b16 %v298, %v297
    %v344 = vpack.c.b16 %v300, %v299
    %v345 = vpack.c.b16 %v302, %v301
    %v346 = vpack.c.b16 %v304, %v303
    %v347 = vpack.c.b16 %v306, %v305
    %v348 = vpack.c.b16 %v308, %v307
    %v349 = vpack.c.b16 %v310, %v309
    %v350 = vpack.c.b16 %v312, %v311
    %v351 = vpack.c.b16 %v314, %v313
    %v352 = vpack.c.b16 %v316, %v315
    %v353 = vpack.c.b16 %v318, %v317
    %v354 = vpack.c.b16 %v320, %v319
    %v355 = vpack.c.b16 %v322, %v321
    %v356 = vpack.c.b16 %v324, %v323
    %389 = vmatpush.bf16.msra.mxu0 %v332
    %390 = vmatpush.bf16.msra.mxu0 %v331
    %391 = vmatpush.bf16.msra.mxu0 %v330
    %392 = vmatpush.bf16.msra.mxu0 %v329
    %393 = vmatpush.bf16.msra.mxu0 %v328
    %394 = vmatpush.bf16.msra.mxu0 %v327
    %395 = vmatpush.bf16.msra.mxu0 %v326
    %396 = vmatpush.bf16.msra.mxu0 %v325
    %397 = vmatmul.bf16.gmra.mxu0 %v117
    %v398 = vpop.f32.mrf.mxu0
    %v399 = vadd.f32 0.0, %v398
    %v400 = vpop.f32.mrf.mxu0
    %v401 = vadd.f32 0.0, %v400
    %402 = vmatmul.bf16.gmra.mxu0 %v121
    %v403 = vpop.f32.mrf.mxu0
    %v404 = vadd.f32 0.0, %v403
    %v405 = vpop.f32.mrf.mxu0
    %v406 = vadd.f32 0.0, %v405
    %407 = vmatmul.bf16.gmra.mxu0 %v125
    %v408 = vpop.f32.mrf.mxu0
    %v409 = vadd.f32 0.0, %v408
    %v410 = vpop.f32.mrf.mxu0
    %v411 = vadd.f32 0.0, %v410
    %412 = vmatmul.bf16.gmra.mxu0 %v129
    %v413 = vpop.f32.mrf.mxu0
    %v414 = vadd.f32 0.0, %v413
    %v415 = vpop.f32.mrf.mxu0
    %v416 = vadd.f32 0.0, %v415
    %417 = vdwg.mxu0
    %418 = vmatpush.bf16.msra.mxu0 %v340
    %419 = vmatpush.bf16.msra.mxu0 %v339
    %420 = vmatpush.bf16.msra.mxu0 %v338
    %421 = vmatpush.bf16.msra.mxu0 %v337
    %422 = vmatpush.bf16.msra.mxu0 %v336
    %423 = vmatpush.bf16.msra.mxu0 %v335
    %424 = vmatpush.bf16.msra.mxu0 %v334
    %425 = vmatpush.bf16.msra.mxu0 %v333
    %426 = vmatmul.bf16.gmra.mxu0 %v118
    %v427 = vpop.f32.mrf.mxu0
    %v428 = vadd.f32 %v399, %v427
    %v429 = vpop.f32.mrf.mxu0
    %v430 = vadd.f32 %v401, %v429
    %431 = vmatmul.bf16.gmra.mxu0 %v122
    %v432 = vpop.f32.mrf.mxu0
    %v433 = vadd.f32 %v404, %v432
    %v434 = vpop.f32.mrf.mxu0
    %v435 = vadd.f32 %v406, %v434
    %436 = vmatmul.bf16.gmra.mxu0 %v126
    %v437 = vpop.f32.mrf.mxu0
    %v438 = vadd.f32 %v409, %v437
    %v439 = vpop.f32.mrf.mxu0
    %v440 = vadd.f32 %v411, %v439
    %441 = vmatmul.bf16.gmra.mxu0 %v130
    %v442 = vpop.f32.mrf.mxu0
    %v443 = vadd.f32 %v414, %v442
    %v444 = vpop.f32.mrf.mxu0
    %v445 = vadd.f32 %v416, %v444
    %446 = vdwg.mxu0
    %447 = vmatpush.bf16.msra.mxu0 %v348
    %448 = vmatpush.bf16.msra.mxu0 %v347
    %449 = vmatpush.bf16.msra.mxu0 %v346
    %450 = vmatpush.bf16.msra.mxu0 %v345
    %451 = vmatpush.bf16.msra.mxu0 %v344
    %452 = vmatpush.bf16.msra.mxu0 %v343
    %453 = vmatpush.bf16.msra.mxu0 %v342
    %454 = vmatpush.bf16.msra.mxu0 %v341
    %455 = vmatmul.bf16.gmra.mxu0 %v119
    %v456 = vpop.f32.mrf.mxu0
    %v457 = vadd.f32 %v428, %v456
    %v458 = vpop.f32.mrf.mxu0
    %v459 = vadd.f32 %v430, %v458
    %460 = vmatmul.bf16.gmra.mxu0 %v123
    %v461 = vpop.f32.mrf.mxu0
    %v462 = vadd.f32 %v433, %v461
    %v463 = vpop.f32.mrf.mxu0
    %v464 = vadd.f32 %v435, %v463
    %465 = vmatmul.bf16.gmra.mxu0 %v127
    %v466 = vpop.f32.mrf.mxu0
    %v467 = vadd.f32 %v438, %v466
    %v468 = vpop.f32.mrf.mxu0
    %v469 = vadd.f32 %v440, %v468
    %470 = vmatmul.bf16.gmra.mxu0 %v131
    %v471 = vpop.f32.mrf.mxu0
    %v472 = vadd.f32 %v443, %v471
    %v473 = vpop.f32.mrf.mxu0
    %v474 = vadd.f32 %v445, %v473
    %475 = vdwg.mxu0
    %476 = vmatpush.bf16.msra.mxu0 %v356
    %477 = vmatpush.bf16.msra.mxu0 %v355
    %478 = vmatpush.bf16.msra.mxu0 %v354
    %479 = vmatpush.bf16.msra.mxu0 %v353
    %480 = vmatpush.bf16.msra.mxu0 %v352
    %481 = vmatpush.bf16.msra.mxu0 %v351
    %482 = vmatpush.bf16.msra.mxu0 %v350
    %483 = vmatpush.bf16.msra.mxu0 %v349
    %484 = vmatmul.bf16.gmra.mxu0 %v120
    %v485 = vpop.f32.mrf.mxu0
    %v486 = vadd.f32 %v457, %v485
    %v487 = vpop.f32.mrf.mxu0
    %v488 = vadd.f32 %v459, %v487
    %489 = vmatmul.bf16.gmra.mxu0 %v124
    %v490 = vpop.f32.mrf.mxu0
    %v491 = vadd.f32 %v462, %v490
    %v492 = vpop.f32.mrf.mxu0
    %v493 = vadd.f32 %v464, %v492
    %494 = vmatmul.bf16.gmra.mxu0 %v128
    %v495 = vpop.f32.mrf.mxu0
    %v496 = vadd.f32 %v467, %v495
    %v497 = vpop.f32.mrf.mxu0
    %v498 = vadd.f32 %v469, %v497
    %499 = vmatmul.bf16.gmra.mxu0 %v132
    %v500 = vpop.f32.mrf.mxu0
    %v501 = vadd.f32 %v472, %v500
    %v502 = vpop.f32.mrf.mxu0
    %v503 = vadd.f32 %v474, %v502
    %504 = vdwg.mxu0
    %v505 = vadd.f32 %v486, %v488
    %v506 = vadd.f32 %v505, %v491
    %v507 = vadd.f32 %v506, %v493
    %v508 = vadd.f32 %v507, %v496
    %v509 = vadd.f32 %v508, %v498
    %v510 = vadd.f32 %v509, %v501
    %v511 = vadd.f32 %v510, %v503
    %v512 = vrot.slane %v511, 4
    %v513 = vadd.f32 %v511, %v512
    %v514 = vrot.slane %v513, 2
    %v515 = vadd.f32 %v513, %v514
    %v516 = vrot.slane %v515, 1
    %v517 = vadd.f32 %v515, %v516
    %v518 = vrcp.pop 64.0
    %v519 = vmul.f32 64.0, %v518
    %v520 = vsub.f32 1.0, %v519
    %v521 = vmul.f32 %v518, %v520
    %v522 = vadd.f32 %v518, %v521
    %vm523 = vweird.f32 %v518
    %v524 = vsel %vm523, %v518, %v522
    %v525 = vmul.f32 %v517, %v524
    %v526 = vsub.f32 %v486, %v525
    %v527 = vsub.f32 %v488, %v525
    %v528 = vsub.f32 %v491, %v525
    %v529 = vsub.f32 %v493, %v525
    %v530 = vsub.f32 %v496, %v525
    %v531 = vsub.f32 %v498, %v525
    %v532 = vsub.f32 %v501, %v525
    %v533 = vsub.f32 %v503, %v525
    %v534 = vmul.f32 %v526, %v526
    %v535 = vmul.f32 %v527, %v527
    %v536 = vmul.f32 %v528, %v528
    %v537 = vmul.f32 %v529, %v529
    %v538 = vmul.f32 %v530, %v530
    %v539 = vmul.f32 %v531, %v531
    %v540 = vmul.f32 %v532, %v532
    %v541 = vmul.f32 %v533, %v533
    %v542 = vadd.f32 %v534, %v535
    %v543 = vadd.f32 %v542, %v536
    %v544 = vadd.f32 %v543, %v537
    %v545 = vadd.f32 %v544, %v538
    %v546 = vadd.f32 %v545, %v539
    %v547 = vadd.f32 %v546, %v540
    %v548 = vadd.f32 %v547, %v541
    %v549 = vrot.slane %v548, 4
    %v550 = vadd.f32 %v548, %v549
    %v551 = vrot.slane %v550, 2
    %v552 = vadd.f32 %v550, %v551
    %v553 = vrot.slane %v552, 1
    %v554 = vadd.f32 %v552, %v553
    %v555 = vmul.f32 %v554, %v524
    %v556 = vld [vmem:[%s2] sm:$0x1]
    %v557 = vadd.f32 %v555, 1e-05
    %v558 = vrsqrt.pop %v557
    %v559 = vmul.f32 %v558, %v557
    %v560 = vmul.f32 %v559, %v558
    %v561 = vmul.f32 0.5, %v560
    %v562 = vsub.f32 1.5, %v561
    %v563 = vmul.f32 %v558, %v562
    %vm564 = vweird.f32 %v557
    %vm565 = vweird.f32 %v558
    %vm566 = vmor %vm564, %vm565
    %v567 = vsel %vm566, %v558, %v563
    %v568 = vmul.f32 %v556, %v567
    %v569 = vld [vmem:[#allocation7] sm:$0x1]
    %v570 = vmul.f32 %v525, %v568
    %v571 = vsub.f32 %v569, %v570
    %v573 = vperm.slane %v568, 0
    %v575 = vmul.f32 %v486, %v573
    %v576 = vmul.f32 %v488, %v573
    %v577 = vmul.f32 %v491, %v573
    %v578 = vmul.f32 %v493, %v573
    %v579 = vmul.f32 %v496, %v573
    %v580 = vmul.f32 %v498, %v573
    %v581 = vmul.f32 %v501, %v573
    %v582 = vmul.f32 %v503, %v573
    %v584 = vperm.slane %v571, 0
    %v586 = vadd.f32 %v575, %v584
    %v587 = vadd.f32 %v576, %v584
    %v588 = vadd.f32 %v577, %v584
    %v589 = vadd.f32 %v578, %v584
    %v590 = vadd.f32 %v579, %v584
    %v591 = vadd.f32 %v580, %v584
    %v592 = vadd.f32 %v581, %v584
    %v593 = vadd.f32 %v582, %v584
    %v594 = vmax.f32 %v586, 0.0
    %v595 = vmax.f32 %v587, 0.0
    %v596 = vmax.f32 %v588, 0.0
    %v597 = vmax.f32 %v589, 0.0
    %v598 = vmax.f32 %v590, 0.0
    %v599 = vmax.f32 %v591, 0.0
    %v600 = vmax.f32 %v592, 0.0
    %v601 = vmax.f32 %v593, 0.0
    %v602 = vpack.c.bf16 %v595, %v594
    %v603 = vpack.c.bf16 %v597, %v596
    %v604 = vpack.c.bf16 %v599, %v598
    %v605 = vpack.c.bf16 %v601, %v600
    %v606 = vld [vmem:[#allocation8] sm:$0xff]
    %v607 = vld [vmem:[#allocation8 + $0x8] sm:$0xff]
    %v608 = vld [vmem:[#allocation8 + $0x10] sm:$0xff]
    %v609 = vld [vmem:[#allocation8 + $0x18] sm:$0xff]
    %v610 = vld [vmem:[#allocation8 + $0x20] sm:$0xff]
    %v611 = vld [vmem:[#allocation8 + $0x28] sm:$0xff]
    %v612 = vld [vmem:[#allocation8 + $0x30] sm:$0xff]
    %v613 = vld [vmem:[#allocation8 + $0x38] sm:$0xff]
    %v614 = vld [vmem:[#allocation8 + $0x40] sm:$0xff]
    %v615 = vld [vmem:[#allocation8 + $0x48] sm:$0xff]
    %v616 = vld [vmem:[#allocation8 + $0x50] sm:$0xff]
    %v617 = vld [vmem:[#allocation8 + $0x58] sm:$0xff]
    %v618 = vld [vmem:[#allocation8 + $0x60] sm:$0xff]
    %v619 = vld [vmem:[#allocation8 + $0x68] sm:$0xff]
    %v620 = vld [vmem:[#allocation8 + $0x70] sm:$0xff]
    %v621 = vld [vmem:[#allocation8 + $0x78] sm:$0xff]
    %v622 = vld [vmem:[%s5] sm:$0x3]
    %v624 = vperm.slane %v622, 0
    %v625 = vperm.slane %v622, 1
    %v644 = vunpack.c.l.b16 %v606
    %v645 = vunpack.c.h.b16 %v606
    %v646 = vunpack.c.l.b16 %v607
    %v647 = vunpack.c.h.b16 %v607
    %v648 = vunpack.c.l.b16 %v608
    %v649 = vunpack.c.h.b16 %v608
    %v650 = vunpack.c.l.b16 %v609
    %v651 = vunpack.c.h.b16 %v609
    %v652 = vunpack.c.l.b16 %v610
    %v653 = vunpack.c.h.b16 %v610
    %v654 = vunpack.c.l.b16 %v611
    %v655 = vunpack.c.h.b16 %v611
    %v656 = vunpack.c.l.b16 %v612
    %v657 = vunpack.c.h.b16 %v612
    %v658 = vunpack.c.l.b16 %v613
    %v659 = vunpack.c.h.b16 %v613
    %v660 = vunpack.c.l.b16 %v614
    %v661 = vunpack.c.h.b16 %v614
    %v662 = vunpack.c.l.b16 %v615
    %v663 = vunpack.c.h.b16 %v615
    %v664 = vunpack.c.l.b16 %v616
    %v665 = vunpack.c.h.b16 %v616
    %v666 = vunpack.c.l.b16 %v617
    %v667 = vunpack.c.h.b16 %v617
    %v668 = vunpack.c.l.b16 %v618
    %v669 = vunpack.c.h.b16 %v618
    %v670 = vunpack.c.l.b16 %v619
    %v671 = vunpack.c.h.b16 %v619
    %v672 = vunpack.c.l.b16 %v620
    %v673 = vunpack.c.h.b16 %v620
    %v674 = vunpack.c.l.b16 %v621
    %v675 = vunpack.c.h.b16 %v621
    %v676 = vpack.c.b16 %v646, %v644
    %v677 = vpack.c.b16 %v647, %v645
    %v678 = vpack.c.b16 %v650, %v648
    %v679 = vpack.c.b16 %v651, %v649
    %v680 = vpack.c.b16 %v654, %v652
    %v681 = vpack.c.b16 %v655, %v653
    %v682 = vpack.c.b16 %v658, %v656
    %v683 = vpack.c.b16 %v659, %v657
    %v684 = vpack.c.b16 %v662, %v660
    %v685 = vpack.c.b16 %v663, %v661
    %v686 = vpack.c.b16 %v666, %v664
    %v687 = vpack.c.b16 %v667, %v665
    %v688 = vpack.c.b16 %v670, %v668
    %v689 = vpack.c.b16 %v671, %v669
    %v690 = vpack.c.b16 %v674, %v672
    %v691 = vpack.c.b16 %v675, %v673
    %708 = vmatpush.bf16.msra.mxu0 %v690
    %709 = vmatpush.bf16.msra.mxu0 %v688
    %710 = vmatpush.bf16.msra.mxu0 %v686
    %711 = vmatpush.bf16.msra.mxu0 %v684
    %712 = vmatpush.bf16.msra.mxu0 %v682
    %713 = vmatpush.bf16.msra.mxu0 %v680
    %714 = vmatpush.bf16.msra.mxu0 %v678
    %715 = vmatpush.bf16.msra.mxu0 %v676
    %716 = vmatmul.bf16.gmra.mxu0 %v602
    %v717 = vpop.f32.mrf.mxu0
    %v718 = vadd.f32 %v624, %v717
    %v719 = vpop.f32.mrf.mxu0
    %v720 = vadd.f32 %v624, %v719
    %721 = vmatmul.bf16.gmra.mxu0 %v603
    %v722 = vpop.f32.mrf.mxu0
    %v723 = vadd.f32 %v624, %v722
    %v724 = vpop.f32.mrf.mxu0
    %v725 = vadd.f32 %v624, %v724
    %726 = vmatmul.bf16.gmra.mxu0 %v604
    %v727 = vpop.f32.mrf.mxu0
    %v728 = vadd.f32 %v624, %v727
    %v729 = vpop.f32.mrf.mxu0
    %v730 = vadd.f32 %v624, %v729
    %731 = vmatmul.bf16.gmra.mxu0 %v605
    %v732 = vpop.f32.mrf.mxu0
    %v733 = vadd.f32 %v624, %v732
    %v734 = vpop.f32.mrf.mxu0
    %v735 = vadd.f32 %v624, %v734
    %736 = vdwg.mxu0
    %737 = vmatpush.bf16.msra.mxu0 %v691
    %738 = vmatpush.bf16.msra.mxu0 %v689
    %739 = vmatpush.bf16.msra.mxu0 %v687
    %740 = vmatpush.bf16.msra.mxu0 %v685
    %741 = vmatpush.bf16.msra.mxu0 %v683
    %742 = vmatpush.bf16.msra.mxu0 %v681
    %743 = vmatpush.bf16.msra.mxu0 %v679
    %744 = vmatpush.bf16.msra.mxu0 %v677
    %745 = vmatmul.bf16.gmra.mxu0 %v602
    %v746 = vpop.f32.mrf.mxu0
    %v747 = vadd.f32 %v625, %v746
    %v748 = vpop.f32.mrf.mxu0
    %v749 = vadd.f32 %v625, %v748
    %750 = vmatmul.bf16.gmra.mxu0 %v603
    %v751 = vpop.f32.mrf.mxu0
    %v752 = vadd.f32 %v625, %v751
    %v753 = vpop.f32.mrf.mxu0
    %v754 = vadd.f32 %v625, %v753
    %755 = vmatmul.bf16.gmra.mxu0 %v604
    %v756 = vpop.f32.mrf.mxu0
    %v757 = vadd.f32 %v625, %v756
    %v758 = vpop.f32.mrf.mxu0
    %v759 = vadd.f32 %v625, %v758
    %760 = vmatmul.bf16.gmra.mxu0 %v605
    %v761 = vpop.f32.mrf.mxu0
    %v762 = vadd.f32 %v625, %v761
    %v763 = vpop.f32.mrf.mxu0
    %v764 = vadd.f32 %v625, %v763
    %765 = vdwg.mxu0
    %766 = vst [vmem:[#allocation10] sm:$0xff] %v718
    %767 = vst [vmem:[#allocation10 + $0x8] sm:$0xff] %v747
    %768 = vst [vmem:[#allocation10 + $0x10] sm:$0xff] %v720
    %769 = vst [vmem:[#allocation10 + $0x18] sm:$0xff] %v749
    %770 = vst [vmem:[#allocation10 + $0x20] sm:$0xff] %v723
    %771 = vst [vmem:[#allocation10 + $0x28] sm:$0xff] %v752
    %772 = vst [vmem:[#allocation10 + $0x30] sm:$0xff] %v725
    %773 = vst [vmem:[#allocation10 + $0x38] sm:$0xff] %v754
    %774 = vst [vmem:[#allocation10 + $0x40] sm:$0xff] %v728
    %775 = vst [vmem:[#allocation10 + $0x48] sm:$0xff] %v757
    %776 = vst [vmem:[#allocation10 + $0x50] sm:$0xff] %v730
    %777 = vst [vmem:[#allocation10 + $0x58] sm:$0xff] %v759
    %778 = vst [vmem:[#allocation10 + $0x60] sm:$0xff] %v733
    %779 = vst [vmem:[#allocation10 + $0x68] sm:$0xff] %v762
    %780 = vst [vmem:[#allocation10 + $0x70] sm:$0xff] %v735
    %781 = vst [vmem:[#allocation10 + $0x78] sm:$0xff] %v764
    // Predicated region
    $region42: #{tpu_custom_call.1} parent=1 // pred_check
      _
    $region43: #{tpu_custom_call.1} parent=1 // pred_check_branch
      %783 = sbr.rel (0) target = $region45
    $region44: #{tpu_custom_call.1} parent=1 // pred_region
      %785 = vsyncadd [#allocation4], 0
      %s786 = sshll.u32 [#allocation10], 4
      %s787 = int_to_ptr.vmem [resolvable:$true] %s786
      %s788 = sshll.u32 %s6, 4
      %s789 = int_to_ptr.hbm [resolvable:$true] %s788
      %794 = dma.vmem_to_hbm [thread:$0]  %s787, 2048, %s789, [#allocation4], 256, 256, 16
    $region45: #{tpu_custom_call.1} parent=1 // pred_fallthru
      _
    // Predicated region
    $region46: #{tpu_custom_call.1} parent=1 // pred_check
      _
    $region47: #{tpu_custom_call.1} parent=1 // pred_check_branch
      %796 = sbr.rel (0) target = $region49
    $region48: #{tpu_custom_call.1} parent=1 // pred_region
      %798 = dma.done [#allocation4], 2048
    $region49: #{tpu_custom_call.1} parent=1 // pred_fallthru
      _
    %799 = vsyncpa [#allocation3], 1
    %800 = vsyncpa [#allocation6], 1
    %801 = vsyncpa [#allocation9], 1
    %802 = vsyncpa [#allocation4], 1

</llo_original>
